<compile_context>
chip_gen: v7x
topology: tpu7x:2x2x1
jax: 0.10.0
libtpu: 0.0.40
codegen_flags: <defaults>
</compile_context>

<pallas_src>
import jax
import jax.numpy as jnp
from jax.experimental import pallas as pl
from jax.experimental.pallas import tpu as pltpu


# --------------------------- fused Pallas kernel ---------------------------
def _make_dblock_kernel(N, H, PAD, STRIDE, M_OUT):
    def kernel(x_ref, w1_ref, w2_ref, w3_ref, b_ref, o_ref, slab):
        # Zero the slab once; pad/gap rows are never written again, so the
        # zero halo needed for "same" padding persists across all three convs.
        slab[...] = jnp.zeros(slab.shape, slab.dtype)

        def put_rows(val):
            # Scatter the M_OUT conv rows back into the per-image data rows
            # (gap rows stay exactly zero -> correct input for the next conv).
            for i in range(N):
                slab[PAD + i * STRIDE:PAD + i * STRIDE + H, :] = \
                    val[i * STRIDE:i * STRIDE + H, :]

        def conv3x3_elu(w_ref, bias_row, d):
            # One MXU dot per conv: the three ky-shifted row windows are
            # concatenated along K to match the K-stacked Toeplitz weights.
            lhs = jnp.concatenate(
                [slab[PAD + (ky - 1) * d:PAD + (ky - 1) * d + M_OUT, :]
                 for ky in range(3)], axis=-1).astype(jnp.bfloat16)
            acc = jnp.dot(lhs, w_ref[...],
                          preferred_element_type=jnp.float32)
            acc = acc + bias_row
            # ELU(alpha=1), overflow-safe, f32 epilogue (v5e has no bf16 VPU/EUP)
            return jnp.where(acc > 0.0, acc,
                             jnp.exp(jnp.minimum(acc, 0.0)) - 1.0)

        # Load the lane-packed image rows into the slab (pad/gap rows stay 0).
        for i in range(N):
            slab[PAD + i * STRIDE:PAD + i * STRIDE + H, :] = \
                x_ref[i].astype(jnp.float32)

        d1 = conv3x3_elu(w1_ref, b_ref[0:1, :], 1)   # (M_OUT, W*C) f32
        put_rows(d1)
        d2 = conv3x3_elu(w2_ref, b_ref[1:2, :], 2)
        put_rows(d2)
        d3 = conv3x3_elu(w3_ref, b_ref[2:3, :], 3)

        out = d1 + d2 + d3
        for i in range(N):
            o_ref[i] = out[i * STRIDE:i * STRIDE + H, :].astype(o_ref.dtype)

    return kernel


# ------------------------ weight / bias repacking --------------------------
def _toeplitz_weight(w_hwio, width, d):
    """(3,3,Cin,Cout) -> (3*width*Cin, width*Cout) K-stacked width-Toeplitz.

    M[ky*W*Cin + wi*Cin + ci, wo*Cout + co] = w[ky, kx, ci, co] when
    wi == wo + (kx-1)*d (same-padding; out-of-range taps dropped == zeros).
    Built with exact f32 elementwise ops (no MXU rounding).
    """
    kh, kw, cin, cout = w_hwio.shape
    wi = jnp.arange(width)[None, :, None]
    wo = jnp.arange(width)[None, None, :]
    kx = jnp.arange(kw)[:, None, None]
    sel = (wi == wo + (kx - 1) * d).astype(w_hwio.dtype)        # (kw, W, W)
    m = (sel[None, :, :, None, :, None] *
         w_hwio[:, :, None, :, None, :]).sum(axis=1)            # (kh,W,ci,W,co)
    return m.reshape(kh * width * cin, width * cout)


def prepack_dblock_params(params, width):
    """One-time repack, hoisted out of the forward path: K-stacked Toeplitz
    weights in bf16 (halves the weight DMA, single MXU pass) + lane-packed
    f32 biases. Conv1's input channels are zero-padded to `channel` so all
    operands are full 128-lane blocks."""
    C = params["b1"].shape[0]
    cin = params["w1"].shape[2]
    w1 = jnp.pad(params["w1"], ((0, 0), (0, 0), (0, C - cin), (0, 0)))
    return {
        "t1": _toeplitz_weight(w1, width, 1).astype(jnp.bfloat16),
        "t2": _toeplitz_weight(params["w2"], width, 2).astype(jnp.bfloat16),
        "t3": _toeplitz_weight(params["w3"], width, 3).astype(jnp.bfloat16),
        "b": jnp.stack([jnp.tile(params["b1"], width),
                        jnp.tile(params["b2"], width),
                        jnp.tile(params["b3"], width)]).astype(jnp.float32),
    }


def init_dblock_params(key, channel):
    """Deterministic synthetic params. HWIO weights; biases zeroed (as in the module)."""
    cin = channel // 2
    k1, k2, k3 = jax.random.split(key, 3)
    return {
        "w1": 0.1 * jax.random.normal(k1, (3, 3, cin, channel), jnp.float32),
        "b1": jnp.zeros((channel,), jnp.float32),
        "w2": 0.1 * jax.random.normal(k2, (3, 3, channel, channel), jnp.float32),
        "b2": jnp.zeros((channel,), jnp.float32),
        "w3": 0.1 * jax.random.normal(k3, (3, 3, channel, channel), jnp.float32),
        "b3": jnp.zeros((channel,), jnp.float32),
    }


# ------------------------------- forward -----------------------------------
@jax.jit
def dblock_forward(x_nchw, packed):
    """Pallas implementation of Dblock.forward (NCHW in / NCHW out)."""
    N, Cin, H, W = x_nchw.shape
    WC = packed["b"].shape[1]
    C = WC // W

    # NCHW -> lane-packed rows (N, H, W*C); input channels zero-padded to C.
    # (Production: keep activations NHWC/lane-packed end-to-end and drop the
    #  HBM transpose round trips on both sides of the kernel.)
    x = jnp.transpose(x_nchw, (0, 2, 3, 1))
    x = jnp.pad(x, ((0, 0), (0, 0), (0, 0), (0, C - Cin)))
    x = x.reshape(N, H, WC).astype(jnp.float32)

    PAD = 8                       # top halo rows (>= max dilation, 8-aligned)
    GAP = 8                       # zero rows between / after images
    STRIDE = H + GAP
    M_OUT = (N - 1) * STRIDE + H  # matmul M: all images in one dot
    TOTAL = PAD + N * STRIDE      # slab rows (last image's GAP = bottom halo)

    kernel = _make_dblock_kernel(N, H, PAD, STRIDE, M_OUT)
    out = pl.pallas_call(
        kernel,
        out_shape=jax.ShapeDtypeStruct((N, H, WC), x_nchw.dtype),
        grid=(1,),   # single step: batch already folded into the matmul M
        in_specs=[
            pl.BlockSpec((N, H, WC), lambda i: (0, 0, 0)),
            pl.BlockSpec(packed["t1"].shape, lambda i: (0, 0)),
            pl.BlockSpec(packed["t2"].shape, lambda i: (0, 0)),
            pl.BlockSpec(packed["t3"].shape, lambda i: (0, 0)),
            pl.BlockSpec((3, WC), lambda i: (0, 0)),
        ],
        out_specs=pl.BlockSpec((N, H, WC), lambda i: (0, 0, 0)),
        scratch_shapes=[pltpu.VMEM((TOTAL, WC), jnp.float32)],
        compiler_params=pltpu.CompilerParams(
            dimension_semantics=("arbitrary",)),
    )(x, packed["t1"], packed["t2"], packed["t3"], packed["b"])

    # (N, H, W*C) -> NCHW
    return jnp.transpose(out.reshape(N, H, W, C), (0, 3, 1, 2))


# ---------------- pure-JAX reference (for correctness check) ----------------
def _ref_conv_elu(x_nhwc, w_hwio, b, d):
    y = jax.lax.conv_general_dilated(
        x_nhwc, w_hwio, window_strides=(1, 1),
        padding=((d, d), (d, d)), rhs_dilation=(d, d),
        dimension_numbers=("NHWC", "HWIO", "NHWC"))
    return jax.nn.elu(y + b)


def dblock_reference(x_nchw, params):
    x = jnp.transpose(x_nchw, (0, 2, 3, 1))
    d1 = _ref_conv_elu(x, params["w1"], params["b1"], 1)
    d2 = _ref_conv_elu(d1, params["w2"], params["b2"], 2)
    d3 = _ref_conv_elu(d2, params["w3"], params["b3"], 3)
    return jnp.transpose(d1 + d2 + d3, (0, 3, 1, 2))


if __name__ == "__main__":
    channel = 8          # Dblock(channel=8) -> input has channel/2 = 4 channels
    N, H, W = 2, 16, 16  # W * channel = 128 -> fully lane-dense blocks

    key = jax.random.PRNGKey(0)
    kx, kp = jax.random.split(key)
    x = jax.random.normal(kx, (N, channel // 2, H, W), jnp.float32)  # NCHW
    params = init_dblock_params(kp, channel)
    packed = prepack_dblock_params(params, W)   # one-time repack (hoisted)

    out = dblock_forward(x, packed)
    out = jax.block_until_ready(out)

    ref = dblock_reference(x, params)
    assert out.shape == (N, channel, H, W), out.shape
    max_err = float(jnp.max(jnp.abs(out - ref)))
    # bf16 matmul operands -> tolerance loosened vs the all-f32 version.
    assert jnp.allclose(out, ref, atol=5e-2, rtol=5e-2), max_err

    print("KERNEL_OK")
</pallas_src>

<mosaic_0001>
module attributes {stable_mosaic.version = 11 : i64} {
  func.func @kernel(%arg0: i32, %arg1: memref<2x16x128xf32, #tpu.memory_space<vmem>>, %arg2: memref<384x128xbf16, #tpu.memory_space<vmem>>, %arg3: memref<384x128xbf16, #tpu.memory_space<vmem>>, %arg4: memref<384x128xbf16, #tpu.memory_space<vmem>>, %arg5: memref<3x128xf32, #tpu.memory_space<vmem>>, %arg6: memref<2x16x128xf32, #tpu.memory_space<vmem>>, %arg7: memref<56x128xf32, #tpu.memory_space<vmem>>) attributes {dimension_semantics = [#tpu.dimension_semantics<arbitrary>], iteration_bounds = array<i64: 1>, scalar_prefetch = 0 : i64, scratch_operands = 1 : i64, tpu.core_type = #tpu.core_type<tc>, window_params = [{pipeline_mode = #tpu.pipeline_mode<synchronous>, transform_indices = @transform_0, window_bounds = array<i64: 2, 16, 128>}, {pipeline_mode = #tpu.pipeline_mode<synchronous>, transform_indices = @transform_1, window_bounds = array<i64: 384, 128>}, {pipeline_mode = #tpu.pipeline_mode<synchronous>, transform_indices = @transform_2, window_bounds = array<i64: 384, 128>}, {pipeline_mode = #tpu.pipeline_mode<synchronous>, transform_indices = @transform_3, window_bounds = array<i64: 384, 128>}, {pipeline_mode = #tpu.pipeline_mode<synchronous>, transform_indices = @transform_4, window_bounds = array<i64: 3, 128>}, {pipeline_mode = #tpu.pipeline_mode<synchronous>, transform_indices = @transform_5, window_bounds = array<i64: 2, 16, 128>}]} {
    %cst = arith.constant 0.000000e+00 : f32
    %0 = vector.broadcast %cst : f32 to vector<56x128xf32>
    %c0 = arith.constant 0 : index
    %c0_0 = arith.constant 0 : index
    %1 = vector.load %arg7[%c0, %c0_0] : memref<56x128xf32, #tpu.memory_space<vmem>>, vector<56x128xf32>
    tpu.vector_store %arg7[%c0, %c0_0], %0 {strides = array<i32>} : memref<56x128xf32, #tpu.memory_space<vmem>>, vector<56x128xf32>,
    %c0_1 = arith.constant 0 : index
    %c0_2 = arith.constant 0 : index
    %c0_3 = arith.constant 0 : index
    %2 = vector.load %arg1[%c0_1, %c0_2, %c0_3] : memref<2x16x128xf32, #tpu.memory_space<vmem>>, vector<1x16x128xf32>
    %3 = vector.shape_cast %2 : vector<1x16x128xf32> to vector<16x128xf32>
    %c8 = arith.constant 8 : index
    %c0_4 = arith.constant 0 : index
    %4 = vector.load %arg7[%c8, %c0_4] : memref<56x128xf32, #tpu.memory_space<vmem>>, vector<16x128xf32>
    tpu.vector_store %arg7[%c8, %c0_4], %3 {strides = array<i32>} : memref<56x128xf32, #tpu.memory_space<vmem>>, vector<16x128xf32>,
    %c1 = arith.constant 1 : index
    %c0_5 = arith.constant 0 : index
    %c0_6 = arith.constant 0 : index
    %5 = vector.load %arg1[%c1, %c0_5, %c0_6] : memref<2x16x128xf32, #tpu.memory_space<vmem>>, vector<1x16x128xf32>
    %6 = vector.shape_cast %5 : vector<1x16x128xf32> to vector<16x128xf32>
    %c32 = arith.constant 32 : index
    %c0_7 = arith.constant 0 : index
    %7 = vector.load %arg7[%c32, %c0_7] : memref<56x128xf32, #tpu.memory_space<vmem>>, vector<16x128xf32>
    tpu.vector_store %arg7[%c32, %c0_7], %6 {strides = array<i32>} : memref<56x128xf32, #tpu.memory_space<vmem>>, vector<16x128xf32>,
    %c0_8 = arith.constant 0 : index
    %c0_9 = arith.constant 0 : index
    %8 = vector.load %arg5[%c0_8, %c0_9] : memref<3x128xf32, #tpu.memory_space<vmem>>, vector<1x128xf32>
    %c7 = arith.constant 7 : index
    %c0_10 = arith.constant 0 : index
    %9 = vector.load %arg7[%c7, %c0_10] : memref<56x128xf32, #tpu.memory_space<vmem>>, vector<40x128xf32>
    %c8_11 = arith.constant 8 : index
    %c0_12 = arith.constant 0 : index
    %10 = vector.load %arg7[%c8_11, %c0_12] : memref<56x128xf32, #tpu.memory_space<vmem>>, vector<40x128xf32>
    %c9 = arith.constant 9 : index
    %c0_13 = arith.constant 0 : index
    %11 = vector.load %arg7[%c9, %c0_13] : memref<56x128xf32, #tpu.memory_space<vmem>>, vector<40x128xf32>
    %12 = tpu.concatenate %9, %10, %11 in 1 : vector<40x128xf32>, vector<40x128xf32>, vector<40x128xf32> -> vector<40x384xf32>
    %13 = arith.truncf %12 : vector<40x384xf32> to vector<40x384xbf16>
    %c0_14 = arith.constant 0 : index
    %c0_15 = arith.constant 0 : index
    %14 = vector.load %arg2[%c0_14, %c0_15] : memref<384x128xbf16, #tpu.memory_space<vmem>>, vector<384x128xbf16>
    %cst_16 = arith.constant dense<0.000000e+00> : vector<40x128xf32>
    %15 = tpu.matmul %13, %14, %cst_16 {dimension_numbers = #tpu.dot_dimension_numbers<[1], [0], [0], [1], [0, 0, 1, 1], [], []>} : vector<40x384xbf16>, vector<384x128xbf16>, vector<40x128xf32> -> vector<40x128xf32>
    %16 = vector.broadcast %8 : vector<1x128xf32> to vector<40x128xf32>
    %17 = arith.addf %15, %16 : vector<40x128xf32>
    %cst_17 = arith.constant 0.000000e+00 : f32
    %18 = vector.broadcast %cst_17 : f32 to vector<40x128xf32>
    %19 = arith.cmpf ogt, %17, %18 : vector<40x128xf32>
    %cst_18 = arith.constant 0.000000e+00 : f32
    %20 = vector.broadcast %cst_18 : f32 to vector<40x128xf32>
    %21 = arith.minimumf %17, %20 : vector<40x128xf32>
    %22 = math.exp %21 : vector<40x128xf32>
    %cst_19 = arith.constant 1.000000e+00 : f32
    %23 = vector.broadcast %cst_19 : f32 to vector<40x128xf32>
    %24 = arith.subf %22, %23 : vector<40x128xf32>
    %25 = arith.select %19, %17, %24 : vector<40x128xi1>, vector<40x128xf32>
    %26 = vector.extract_strided_slice %25 {offsets = [0, 0], sizes = [16, 128], strides = [1, 1]} : vector<40x128xf32> to vector<16x128xf32>
    %c8_20 = arith.constant 8 : index
    %c0_21 = arith.constant 0 : index
    %27 = vector.load %arg7[%c8_20, %c0_21] : memref<56x128xf32, #tpu.memory_space<vmem>>, vector<16x128xf32>
    tpu.vector_store %arg7[%c8_20, %c0_21], %26 {strides = array<i32>} : memref<56x128xf32, #tpu.memory_space<vmem>>, vector<16x128xf32>,
    %28 = vector.extract_strided_slice %25 {offsets = [24, 0], sizes = [16, 128], strides = [1, 1]} : vector<40x128xf32> to vector<16x128xf32>
    %c32_22 = arith.constant 32 : index
    %c0_23 = arith.constant 0 : index
    %29 = vector.load %arg7[%c32_22, %c0_23] : memref<56x128xf32, #tpu.memory_space<vmem>>, vector<16x128xf32>
    tpu.vector_store %arg7[%c32_22, %c0_23], %28 {strides = array<i32>} : memref<56x128xf32, #tpu.memory_space<vmem>>, vector<16x128xf32>,
    %c1_24 = arith.constant 1 : index
    %c0_25 = arith.constant 0 : index
    %30 = vector.load %arg5[%c1_24, %c0_25] : memref<3x128xf32, #tpu.memory_space<vmem>>, vector<1x128xf32>
    %c6 = arith.constant 6 : index
    %c0_26 = arith.constant 0 : index
    %31 = vector.load %arg7[%c6, %c0_26] : memref<56x128xf32, #tpu.memory_space<vmem>>, vector<40x128xf32>
    %c8_27 = arith.constant 8 : index
    %c0_28 = arith.constant 0 : index
    %32 = vector.load %arg7[%c8_27, %c0_28] : memref<56x128xf32, #tpu.memory_space<vmem>>, vector<40x128xf32>
    %c10 = arith.constant 10 : index
    %c0_29 = arith.constant 0 : index
    %33 = vector.load %arg7[%c10, %c0_29] : memref<56x128xf32, #tpu.memory_space<vmem>>, vector<40x128xf32>
    %34 = tpu.concatenate %31, %32, %33 in 1 : vector<40x128xf32>, vector<40x128xf32>, vector<40x128xf32> -> vector<40x384xf32>
    %35 = arith.truncf %34 : vector<40x384xf32> to vector<40x384xbf16>
    %c0_30 = arith.constant 0 : index
    %c0_31 = arith.constant 0 : index
    %36 = vector.load %arg3[%c0_30, %c0_31] : memref<384x128xbf16, #tpu.memory_space<vmem>>, vector<384x128xbf16>
    %cst_32 = arith.constant dense<0.000000e+00> : vector<40x128xf32>
    %37 = tpu.matmul %35, %36, %cst_32 {dimension_numbers = #tpu.dot_dimension_numbers<[1], [0], [0], [1], [0, 0, 1, 1], [], []>} : vector<40x384xbf16>, vector<384x128xbf16>, vector<40x128xf32> -> vector<40x128xf32>
    %38 = vector.broadcast %30 : vector<1x128xf32> to vector<40x128xf32>
    %39 = arith.addf %37, %38 : vector<40x128xf32>
    %cst_33 = arith.constant 0.000000e+00 : f32
    %40 = vector.broadcast %cst_33 : f32 to vector<40x128xf32>
    %41 = arith.cmpf ogt, %39, %40 : vector<40x128xf32>
    %cst_34 = arith.constant 0.000000e+00 : f32
    %42 = vector.broadcast %cst_34 : f32 to vector<40x128xf32>
    %43 = arith.minimumf %39, %42 : vector<40x128xf32>
    %44 = math.exp %43 : vector<40x128xf32>
    %cst_35 = arith.constant 1.000000e+00 : f32
    %45 = vector.broadcast %cst_35 : f32 to vector<40x128xf32>
    %46 = arith.subf %44, %45 : vector<40x128xf32>
    %47 = arith.select %41, %39, %46 : vector<40x128xi1>, vector<40x128xf32>
    %48 = vector.extract_strided_slice %47 {offsets = [0, 0], sizes = [16, 128], strides = [1, 1]} : vector<40x128xf32> to vector<16x128xf32>
    %c8_36 = arith.constant 8 : index
    %c0_37 = arith.constant 0 : index
    %49 = vector.load %arg7[%c8_36, %c0_37] : memref<56x128xf32, #tpu.memory_space<vmem>>, vector<16x128xf32>
    tpu.vector_store %arg7[%c8_36, %c0_37], %48 {strides = array<i32>} : memref<56x128xf32, #tpu.memory_space<vmem>>, vector<16x128xf32>,
    %50 = vector.extract_strided_slice %47 {offsets = [24, 0], sizes = [16, 128], strides = [1, 1]} : vector<40x128xf32> to vector<16x128xf32>
    %c32_38 = arith.constant 32 : index
    %c0_39 = arith.constant 0 : index
    %51 = vector.load %arg7[%c32_38, %c0_39] : memref<56x128xf32, #tpu.memory_space<vmem>>, vector<16x128xf32>
    tpu.vector_store %arg7[%c32_38, %c0_39], %50 {strides = array<i32>} : memref<56x128xf32, #tpu.memory_space<vmem>>, vector<16x128xf32>,
    %c2 = arith.constant 2 : index
    %c0_40 = arith.constant 0 : index
    %52 = vector.load %arg5[%c2, %c0_40] : memref<3x128xf32, #tpu.memory_space<vmem>>, vector<1x128xf32>
    %c5 = arith.constant 5 : index
    %c0_41 = arith.constant 0 : index
    %53 = vector.load %arg7[%c5, %c0_41] : memref<56x128xf32, #tpu.memory_space<vmem>>, vector<40x128xf32>
    %c8_42 = arith.constant 8 : index
    %c0_43 = arith.constant 0 : index
    %54 = vector.load %arg7[%c8_42, %c0_43] : memref<56x128xf32, #tpu.memory_space<vmem>>, vector<40x128xf32>
    %c11 = arith.constant 11 : index
    %c0_44 = arith.constant 0 : index
    %55 = vector.load %arg7[%c11, %c0_44] : memref<56x128xf32, #tpu.memory_space<vmem>>, vector<40x128xf32>
    %56 = tpu.concatenate %53, %54, %55 in 1 : vector<40x128xf32>, vector<40x128xf32>, vector<40x128xf32> -> vector<40x384xf32>
    %57 = arith.truncf %56 : vector<40x384xf32> to vector<40x384xbf16>
    %c0_45 = arith.constant 0 : index
    %c0_46 = arith.constant 0 : index
    %58 = vector.load %arg4[%c0_45, %c0_46] : memref<384x128xbf16, #tpu.memory_space<vmem>>, vector<384x128xbf16>
    %cst_47 = arith.constant dense<0.000000e+00> : vector<40x128xf32>
    %59 = tpu.matmul %57, %58, %cst_47 {dimension_numbers = #tpu.dot_dimension_numbers<[1], [0], [0], [1], [0, 0, 1, 1], [], []>} : vector<40x384xbf16>, vector<384x128xbf16>, vector<40x128xf32> -> vector<40x128xf32>
    %60 = vector.broadcast %52 : vector<1x128xf32> to vector<40x128xf32>
    %61 = arith.addf %59, %60 : vector<40x128xf32>
    %cst_48 = arith.constant 0.000000e+00 : f32
    %62 = vector.broadcast %cst_48 : f32 to vector<40x128xf32>
    %63 = arith.cmpf ogt, %61, %62 : vector<40x128xf32>
    %cst_49 = arith.constant 0.000000e+00 : f32
    %64 = vector.broadcast %cst_49 : f32 to vector<40x128xf32>
    %65 = arith.minimumf %61, %64 : vector<40x128xf32>
    %66 = math.exp %65 : vector<40x128xf32>
    %cst_50 = arith.constant 1.000000e+00 : f32
    %67 = vector.broadcast %cst_50 : f32 to vector<40x128xf32>
    %68 = arith.subf %66, %67 : vector<40x128xf32>
    %69 = arith.select %63, %61, %68 : vector<40x128xi1>, vector<40x128xf32>
    %70 = arith.addf %25, %47 : vector<40x128xf32>
    %71 = arith.addf %70, %69 : vector<40x128xf32>
    %72 = vector.extract_strided_slice %71 {offsets = [0, 0], sizes = [16, 128], strides = [1, 1]} : vector<40x128xf32> to vector<16x128xf32>
    %c0_51 = arith.constant 0 : index
    %c0_52 = arith.constant 0 : index
    %c0_53 = arith.constant 0 : index
    %73 = vector.load %arg6[%c0_51, %c0_52, %c0_53] : memref<2x16x128xf32, #tpu.memory_space<vmem>>, vector<1x16x128xf32>
    %74 = vector.shape_cast %73 : vector<1x16x128xf32> to vector<16x128xf32>
    %75 = vector.shape_cast %72 : vector<16x128xf32> to vector<1x16x128xf32>
    tpu.vector_store %arg6[%c0_51, %c0_52, %c0_53], %75 {strides = array<i32>} : memref<2x16x128xf32, #tpu.memory_space<vmem>>, vector<1x16x128xf32>,
    %76 = vector.extract_strided_slice %71 {offsets = [24, 0], sizes = [16, 128], strides = [1, 1]} : vector<40x128xf32> to vector<16x128xf32>
    %c1_54 = arith.constant 1 : index
    %c0_55 = arith.constant 0 : index
    %c0_56 = arith.constant 0 : index
    %77 = vector.load %arg6[%c1_54, %c0_55, %c0_56] : memref<2x16x128xf32, #tpu.memory_space<vmem>>, vector<1x16x128xf32>
    %78 = vector.shape_cast %77 : vector<1x16x128xf32> to vector<16x128xf32>
    %79 = vector.shape_cast %76 : vector<16x128xf32> to vector<1x16x128xf32>
    tpu.vector_store %arg6[%c1_54, %c0_55, %c0_56], %79 {strides = array<i32>} : memref<2x16x128xf32, #tpu.memory_space<vmem>>, vector<1x16x128xf32>,
    return
  }
  func.func @transform_0(%arg0: i32) -> (i32, i32, i32) {
    %c0_i32 = arith.constant 0 : i32
    %c0_i32_0 = arith.constant 0 : i32
    %c0_i32_1 = arith.constant 0 : i32
    %c0_i32_2 = arith.constant 0 : i32
    return %c0_i32, %c0_i32_0, %c0_i32_1 : i32, i32, i32
  }
  func.func @transform_1(%arg0: i32) -> (i32, i32) {
    %c0_i32 = arith.constant 0 : i32
    %c0_i32_0 = arith.constant 0 : i32
    %c0_i32_1 = arith.constant 0 : i32
    return %c0_i32, %c0_i32_0 : i32, i32
  }
  func.func @transform_2(%arg0: i32) -> (i32, i32) {
    %c0_i32 = arith.constant 0 : i32
    %c0_i32_0 = arith.constant 0 : i32
    %c0_i32_1 = arith.constant 0 : i32
    return %c0_i32, %c0_i32_0 : i32, i32
  }
  func.func @transform_3(%arg0: i32) -> (i32, i32) {
    %c0_i32 = arith.constant 0 : i32
    %c0_i32_0 = arith.constant 0 : i32
    %c0_i32_1 = arith.constant 0 : i32
    return %c0_i32, %c0_i32_0 : i32, i32
  }
  func.func @transform_4(%arg0: i32) -> (i32, i32) {
    %c0_i32 = arith.constant 0 : i32
    %c0_i32_0 = arith.constant 0 : i32
    %c0_i32_1 = arith.constant 0 : i32
    return %c0_i32, %c0_i32_0 : i32, i32
  }
  func.func @transform_5(%arg0: i32) -> (i32, i32, i32) {
    %c0_i32 = arith.constant 0 : i32
    %c0_i32_0 = arith.constant 0 : i32
    %c0_i32_1 = arith.constant 0 : i32
    %c0_i32_2 = arith.constant 0 : i32
    return %c0_i32, %c0_i32_0, %c0_i32_1 : i32, i32, i32
  }
}

</mosaic_0001>

<llo_original>
// kernel: dblock_forward.1
$region0: #{dblock_forward.1}
  #allocation0 [shape = 'u32[]', space=smem, size = 0x4, offset = 0x4, fixed_abs, tag = 'smem constant byte address 0x4 - core index']
  #allocation1 [shape = 'u32[144,128]{1,0:T(1,128)}', space=vmem, size = 0x12000, scoped, tag = 'internal scratch']
  #allocation2 [shape = 'f32[56,128]{1,0:T(8,128)}', space=vmem, size = 0x7000, scoped, tag = 'scratch operand']
  %s0 = inlined_call_operand.vmem [shape: f32[2,16,128], index: 0, kind: input, shape index: {}]
  %s1 = inlined_call_operand.vmem [shape: bf16[384,128], index: 1, kind: input, shape index: {}]
  %s2 = inlined_call_operand.vmem [shape: bf16[384,128], index: 2, kind: input, shape index: {}]
  %s3 = inlined_call_operand.vmem [shape: bf16[384,128], index: 3, kind: input, shape index: {}]
  %s4 = inlined_call_operand.vmem [shape: f32[3,128], index: 4, kind: input, shape index: {}]
  %s5 = inlined_call_operand.vmem [shape: f32[2,16,128], index: 5, kind: output, shape index: {}]
  %s6 = sld [smem:[#allocation0]]
  $region30: #{dblock_forward.1} parent=0
    _
  %s8 = ssub.s32 1, %s6
  %s9 = scalar_select 0, %s8, %s6
  // Predicated region
  $region2: #{dblock_forward.1} parent=0 // pred_check
    _
  $region3: #{dblock_forward.1} parent=0 // pred_check_branch
    %11 = sbr.rel (0) target = $region5
  $region4: #{dblock_forward.1} parent=0 // pred_region
    _
  $region5: #{dblock_forward.1} parent=0 // pred_fallthru
    _
  // Predicated region
  $region6: #{dblock_forward.1} parent=0 // pred_check
    _
  $region7: #{dblock_forward.1} parent=0 // pred_check_branch
    %13 = sbr.rel (0) target = $region9
  $region8: #{dblock_forward.1} parent=0 // pred_region
    _
  $region9: #{dblock_forward.1} parent=0 // pred_fallthru
    _
  // Predicated region
  $region10: #{dblock_forward.1} parent=0 // pred_check
    _
  $region11: #{dblock_forward.1} parent=0 // pred_check_branch
    %15 = sbr.rel (0) target = $region13
  $region12: #{dblock_forward.1} parent=0 // pred_region
    _
  $region13: #{dblock_forward.1} parent=0 // pred_fallthru
    _
  // Predicated region
  $region14: #{dblock_forward.1} parent=0 // pred_check
    _
  $region15: #{dblock_forward.1} parent=0 // pred_check_branch
    %17 = sbr.rel (0) target = $region17
  $region16: #{dblock_forward.1} parent=0 // pred_region
    _
  $region17: #{dblock_forward.1} parent=0 // pred_fallthru
    _
  // Predicated region
  $region18: #{dblock_forward.1} parent=0 // pred_check
    _
  $region19: #{dblock_forward.1} parent=0 // pred_check_branch
    %19 = sbr.rel (0) target = $region21
  $region20: #{dblock_forward.1} parent=0 // pred_region
    _
  $region21: #{dblock_forward.1} parent=0 // pred_fallthru
    _
  %21 = vst [vmem:[#allocation2] sm:$0xff] 0.0
  %22 = vst [vmem:[#allocation2 + $0x8] sm:$0xff] 0.0
  %23 = vst [vmem:[#allocation2 + $0x10] sm:$0xff] 0.0
  %24 = vst [vmem:[#allocation2 + $0x18] sm:$0xff] 0.0
  %25 = vst [vmem:[#allocation2 + $0x20] sm:$0xff] 0.0
  %26 = vst [vmem:[#allocation2 + $0x28] sm:$0xff] 0.0
  %27 = vst [vmem:[#allocation2 + $0x30] sm:$0xff] 0.0
  %v28 = vld [vmem:[%s0] sm:$0xff]
  %v29 = vld [vmem:[%s0 + $0x8] sm:$0xff]
  %30 = vst [vmem:[#allocation2 + $0x8] sm:$0xff] %v28
  %31 = vst [vmem:[#allocation2 + $0x10] sm:$0xff] %v29
  %s32 = scalar_lea.vmem %s0, 16
  %v33 = vld [vmem:[%s32] sm:$0xff]
  %v34 = vld [vmem:[%s32 + $0x8] sm:$0xff]
  %35 = vst [vmem:[#allocation2 + $0x20] sm:$0xff] %v33
  %36 = vst [vmem:[#allocation2 + $0x28] sm:$0xff] %v34
  %v37 = vld [vmem:[%s4] sm:$0x1]
  %v38 = vld [vmem:[#allocation2 + $0x7] sm:$0xff]
  %v39 = vld [vmem:[#allocation2 + $0xf] sm:$0xff]
  %v40 = vld [vmem:[#allocation2 + $0x17] sm:$0xff]
  %v41 = vld [vmem:[#allocation2 + $0x1f] sm:$0xff]
  %v42 = vld [vmem:[#allocation2 + $0x27] sm:$0xff]
  %v43 = vld [vmem:[#allocation2 + $0x8] sm:$0xff]
  %v44 = vld [vmem:[#allocation2 + $0x10] sm:$0xff]
  %v45 = vld [vmem:[#allocation2 + $0x18] sm:$0xff]
  %v46 = vld [vmem:[#allocation2 + $0x20] sm:$0xff]
  %v47 = vld [vmem:[#allocation2 + $0x28] sm:$0xff]
  %v48 = vld [vmem:[#allocation2 + $0x9] sm:$0xff]
  %v49 = vld [vmem:[#allocation2 + $0x11] sm:$0xff]
  %v50 = vld [vmem:[#allocation2 + $0x19] sm:$0xff]
  %v51 = vld [vmem:[#allocation2 + $0x21] sm:$0xff]
  %v52 = vld [vmem:[#allocation2 + $0x29] sm:$0xff]
  %v53 = vpack.c.bf16 %v39, %v38
  %v54 = vpack.c.bf16 %v44, %v43
  %v55 = vpack.c.bf16 %v49, %v48
  %v56 = vpack.c.bf16 %v41, %v40
  %v57 = vpack.c.bf16 %v46, %v45
  %v58 = vpack.c.bf16 %v51, %v50
  %v59 = vpack.c.bf16 %v42, %v42
  %v60 = vpack.c.bf16 %v47, %v47
  %v61 = vpack.c.bf16 %v52, %v52
  %v62 = vld [vmem:[%s1] sm:$0xf]
  %v63 = vld [vmem:[%s1 + $0x4] sm:$0xf]
  %v64 = vld [vmem:[%s1 + $0x8] sm:$0xf]
  %v65 = vld [vmem:[%s1 + $0xc] sm:$0xf]
  %v66 = vld [vmem:[%s1 + $0x10] sm:$0xf]
  %v67 = vld [vmem:[%s1 + $0x14] sm:$0xf]
  %v68 = vld [vmem:[%s1 + $0x18] sm:$0xf]
  %v69 = vld [vmem:[%s1 + $0x1c] sm:$0xf]
  %v70 = vld [vmem:[%s1 + $0x20] sm:$0xf]
  %v71 = vld [vmem:[%s1 + $0x24] sm:$0xf]
  %v72 = vld [vmem:[%s1 + $0x28] sm:$0xf]
  %v73 = vld [vmem:[%s1 + $0x2c] sm:$0xf]
  %v74 = vld [vmem:[%s1 + $0x30] sm:$0xf]
  %v75 = vld [vmem:[%s1 + $0x34] sm:$0xf]
  %v76 = vld [vmem:[%s1 + $0x38] sm:$0xf]
  %v77 = vld [vmem:[%s1 + $0x3c] sm:$0xf]
  %v78 = vld [vmem:[%s1 + $0x40] sm:$0xf]
  %v79 = vld [vmem:[%s1 + $0x44] sm:$0xf]
  %v80 = vld [vmem:[%s1 + $0x48] sm:$0xf]
  %v81 = vld [vmem:[%s1 + $0x4c] sm:$0xf]
  %v82 = vld [vmem:[%s1 + $0x50] sm:$0xf]
  %v83 = vld [vmem:[%s1 + $0x54] sm:$0xf]
  %v84 = vld [vmem:[%s1 + $0x58] sm:$0xf]
  %v85 = vld [vmem:[%s1 + $0x5c] sm:$0xf]
  %v86 = vld [vmem:[%s1 + $0x60] sm:$0xf]
  %v87 = vld [vmem:[%s1 + $0x64] sm:$0xf]
  %v88 = vld [vmem:[%s1 + $0x68] sm:$0xf]
  %v89 = vld [vmem:[%s1 + $0x6c] sm:$0xf]
  %v90 = vld [vmem:[%s1 + $0x70] sm:$0xf]
  %v91 = vld [vmem:[%s1 + $0x74] sm:$0xf]
  %v92 = vld [vmem:[%s1 + $0x78] sm:$0xf]
  %v93 = vld [vmem:[%s1 + $0x7c] sm:$0xf]
  %v94 = vld [vmem:[%s1 + $0x80] sm:$0xf]
  %v95 = vld [vmem:[%s1 + $0x84] sm:$0xf]
  %v96 = vld [vmem:[%s1 + $0x88] sm:$0xf]
  %v97 = vld [vmem:[%s1 + $0x8c] sm:$0xf]
  %v98 = vld [vmem:[%s1 + $0x90] sm:$0xf]
  %v99 = vld [vmem:[%s1 + $0x94] sm:$0xf]
  %v100 = vld [vmem:[%s1 + $0x98] sm:$0xf]
  %v101 = vld [vmem:[%s1 + $0x9c] sm:$0xf]
  %v102 = vld [vmem:[%s1 + $0xa0] sm:$0xf]
  %v103 = vld [vmem:[%s1 + $0xa4] sm:$0xf]
  %v104 = vld [vmem:[%s1 + $0xa8] sm:$0xf]
  %v105 = vld [vmem:[%s1 + $0xac] sm:$0xf]
  %v106 = vld [vmem:[%s1 + $0xb0] sm:$0xf]
  %v107 = vld [vmem:[%s1 + $0xb4] sm:$0xf]
  %v108 = vld [vmem:[%s1 + $0xb8] sm:$0xf]
  %v109 = vld [vmem:[%s1 + $0xbc] sm:$0xf]
  %v110 = vlaneseq
  %v111 = vshrl.u32 %v110, 7
  %v112 = vsub.s32 0, %v111
  %v113 = vrot.slane %v37, %v112
  %v162 = vunpack.c.l.b16 %v62
  %v163 = vunpack.c.l.b16 %v63
  %v164 = vunpack.c.l.b16 %v64
  %v165 = vunpack.c.l.b16 %v65
  %v166 = vunpack.c.l.b16 %v66
  %v167 = vunpack.c.l.b16 %v67
  %v168 = vunpack.c.l.b16 %v68
  %v169 = vunpack.c.l.b16 %v69
  %v170 = vunpack.c.l.b16 %v70
  %v171 = vunpack.c.l.b16 %v71
  %v172 = vunpack.c.l.b16 %v72
  %v173 = vunpack.c.l.b16 %v73
  %v174 = vunpack.c.l.b16 %v74
  %v175 = vunpack.c.l.b16 %v75
  %v176 = vunpack.c.l.b16 %v76
  %v177 = vunpack.c.l.b16 %v77
  %v178 = vunpack.c.l.b16 %v78
  %v179 = vunpack.c.l.b16 %v79
  %v180 = vunpack.c.l.b16 %v80
  %v181 = vunpack.c.l.b16 %v81
  %v182 = vunpack.c.l.b16 %v82
  %v183 = vunpack.c.l.b16 %v83
  %v184 = vunpack.c.l.b16 %v84
  %v185 = vunpack.c.l.b16 %v85
  %v186 = vunpack.c.l.b16 %v86
  %v187 = vunpack.c.l.b16 %v87
  %v188 = vunpack.c.l.b16 %v88
  %v189 = vunpack.c.l.b16 %v89
  %v190 = vunpack.c.l.b16 %v90
  %v191 = vunpack.c.l.b16 %v91
  %v192 = vunpack.c.l.b16 %v92
  %v193 = vunpack.c.l.b16 %v93
  %v194 = vunpack.c.l.b16 %v94
  %v195 = vunpack.c.l.b16 %v95
  %v196 = vunpack.c.l.b16 %v96
  %v197 = vunpack.c.l.b16 %v97
  %v198 = vunpack.c.l.b16 %v98
  %v199 = vunpack.c.l.b16 %v99
  %v200 = vunpack.c.l.b16 %v100
  %v201 = vunpack.c.l.b16 %v101
  %v202 = vunpack.c.l.b16 %v102
  %v203 = vunpack.c.l.b16 %v103
  %v204 = vunpack.c.l.b16 %v104
  %v205 = vunpack.c.l.b16 %v105
  %v206 = vunpack.c.l.b16 %v106
  %v207 = vunpack.c.l.b16 %v107
  %v208 = vunpack.c.l.b16 %v108
  %v209 = vunpack.c.l.b16 %v109
  %v210 = vpack.c.b16 %v163, %v162
  %v211 = vpack.c.b16 %v165, %v164
  %v212 = vpack.c.b16 %v167, %v166
  %v213 = vpack.c.b16 %v169, %v168
  %v214 = vpack.c.b16 %v171, %v170
  %v215 = vpack.c.b16 %v173, %v172
  %v216 = vpack.c.b16 %v175, %v174
  %v217 = vpack.c.b16 %v177, %v176
  %v218 = vpack.c.b16 %v179, %v178
  %v219 = vpack.c.b16 %v181, %v180
  %v220 = vpack.c.b16 %v183, %v182
  %v221 = vpack.c.b16 %v185, %v184
  %v222 = vpack.c.b16 %v187, %v186
  %v223 = vpack.c.b16 %v189, %v188
  %v224 = vpack.c.b16 %v191, %v190
  %v225 = vpack.c.b16 %v193, %v192
  %v226 = vpack.c.b16 %v195, %v194
  %v227 = vpack.c.b16 %v197, %v196
  %v228 = vpack.c.b16 %v199, %v198
  %v229 = vpack.c.b16 %v201, %v200
  %v230 = vpack.c.b16 %v203, %v202
  %v231 = vpack.c.b16 %v205, %v204
  %v232 = vpack.c.b16 %v207, %v206
  %v233 = vpack.c.b16 %v209, %v208
  %258 = vmatprep.subr.bf16.mxu0 0
  %259 = vmatpush1.bf16.msra.mxu0 %v210
  %260 = vmatprep.subr.bf16.mxu0 0
  %261 = vmatpush1.bf16.msra.mxu0 %v211
  %262 = vmatprep.subr.bf16.mxu0 0
  %263 = vmatpush1.bf16.msra.mxu0 %v212
  %264 = vmatprep.subr.bf16.mxu0 0
  %265 = vmatpush1.bf16.msra.mxu0 %v213
  %266 = vmatprep.subr.bf16.mxu0 0
  %267 = vmatpush1.bf16.msra.mxu0 %v214
  %268 = vmatprep.subr.bf16.mxu0 0
  %269 = vmatpush1.bf16.msra.mxu0 %v215
  %270 = vmatprep.subr.bf16.mxu0 0
  %271 = vmatpush1.bf16.msra.mxu0 %v216
  %272 = vmatprep.subr.bf16.mxu0 0
  %273 = vmatpush1.bf16.msra.mxu0 %v217
  %274 = vmatprep.subr.bf16.mxu0 0
  %275 = vmatpush1.bf16.msra.mxu0 %v218
  %276 = vmatprep.subr.bf16.mxu0 0
  %277 = vmatpush1.bf16.msra.mxu0 %v219
  %278 = vmatprep.subr.bf16.mxu0 0
  %279 = vmatpush1.bf16.msra.mxu0 %v220
  %280 = vmatprep.subr.bf16.mxu0 0
  %281 = vmatpush1.bf16.msra.mxu0 %v221
  %282 = vmatprep.subr.bf16.mxu0 0
  %283 = vmatpush1.bf16.msra.mxu0 %v222
  %284 = vmatprep.subr.bf16.mxu0 0
  %285 = vmatpush1.bf16.msra.mxu0 %v223
  %286 = vmatprep.subr.bf16.mxu0 0
  %287 = vmatpush1.bf16.msra.mxu0 %v224
  %288 = vmatprep.subr.bf16.mxu0 0
  %289 = vmatpush1.bf16.msra.mxu0 %v225
  %290 = vmatprep.mubr.bf16.mxu0 %v54
  %291 = vmatmul.mubr.bf16.gmra.mrb[0].mxu0 %v53
  %v292 = vpop.f32.mrb[0].mxu0
  %v293 = vadd.f32 %v113, %v292
  %v294 = vpop.f32.mrb[0].mxu0
  %v295 = vpop.f32.mrb[0].mxu0
  %v296 = vadd.f32 %v113, %v295
  %v297 = vpop.f32.mrb[0].mxu0
  %298 = vmatprep.mubr.bf16.mxu0 %v57
  %299 = vmatmul.mubr.bf16.gmra.mrb[0].mxu0 %v56
  %v300 = vpop.f32.mrb[0].mxu0
  %v301 = vpop.f32.mrb[0].mxu0
  %v302 = vpop.f32.mrb[0].mxu0
  %v303 = vadd.f32 %v113, %v302
  %v304 = vpop.f32.mrb[0].mxu0
  %305 = vmatprep.mubr.bf16.mxu0 %v60
  %306 = vmatmul.mubr.bf16.gmra.mrb[0].mxu0 %v59
  %v307 = vpop.f32.mrb[0].mxu0
  %v308 = vadd.f32 %v113, %v307
  %v309 = vpop.f32.mrb[0].mxu0
  %v310 = vpop.f32.mrb[0].mxu0
  %v311 = vpop.f32.mrb[0].mxu0
  %312 = vdwg.mxu0
  %313 = vmatprep.subr.bf16.mxu0 0
  %314 = vmatpush1.bf16.msra.mxu0 %v226
  %315 = vmatprep.subr.bf16.mxu0 0
  %316 = vmatpush1.bf16.msra.mxu0 %v227
  %317 = vmatprep.subr.bf16.mxu0 0
  %318 = vmatpush1.bf16.msra.mxu0 %v228
  %319 = vmatprep.subr.bf16.mxu0 0
  %320 = vmatpush1.bf16.msra.mxu0 %v229
  %321 = vmatprep.subr.bf16.mxu0 0
  %322 = vmatpush1.bf16.msra.mxu0 %v230
  %323 = vmatprep.subr.bf16.mxu0 0
  %324 = vmatpush1.bf16.msra.mxu0 %v231
  %325 = vmatprep.subr.bf16.mxu0 0
  %326 = vmatpush1.bf16.msra.mxu0 %v232
  %327 = vmatprep.subr.bf16.mxu0 0
  %328 = vmatpush1.bf16.msra.mxu0 %v233
  %329 = vmatprep.subr.bf16.mxu0 0
  %330 = vmatpush1.bf16.msra.mxu0 0
  %331 = vmatprep.subr.bf16.mxu0 0
  %332 = vmatpush1.bf16.msra.mxu0 0
  %333 = vmatprep.subr.bf16.mxu0 0
  %334 = vmatpush1.bf16.msra.mxu0 0
  %335 = vmatprep.subr.bf16.mxu0 0
  %336 = vmatpush1.bf16.msra.mxu0 0
  %337 = vmatprep.subr.bf16.mxu0 0
  %338 = vmatpush1.bf16.msra.mxu0 0
  %339 = vmatprep.subr.bf16.mxu0 0
  %340 = vmatpush1.bf16.msra.mxu0 0
  %341 = vmatprep.subr.bf16.mxu0 0
  %342 = vmatpush1.bf16.msra.mxu0 0
  %343 = vmatprep.subr.bf16.mxu0 0
  %344 = vmatpush1.bf16.msra.mxu0 0
  %345 = vmatprep.mubr.bf16.mxu0 0
  %346 = vmatmul.mubr.bf16.gmra.mrb[0].mxu0 %v55
  %v347 = vpop.f32.mrb[0].mxu0
  %v348 = vadd.f32 %v293, %v347
  %v349 = vpop.f32.mrb[0].mxu0
  %v350 = vpop.f32.mrb[0].mxu0
  %v351 = vadd.f32 %v296, %v350
  %v352 = vpop.f32.mrb[0].mxu0
  %353 = vmatprep.mubr.bf16.mxu0 0
  %354 = vmatmul.mubr.bf16.gmra.mrb[0].mxu0 %v58
  %v355 = vpop.f32.mrb[0].mxu0
  %v356 = vpop.f32.mrb[0].mxu0
  %v357 = vpop.f32.mrb[0].mxu0
  %v358 = vadd.f32 %v303, %v357
  %v359 = vpop.f32.mrb[0].mxu0
  %360 = vmatprep.mubr.bf16.mxu0 0
  %361 = vmatmul.mubr.bf16.gmra.mrb[0].mxu0 %v61
  %v362 = vpop.f32.mrb[0].mxu0
  %v363 = vadd.f32 %v308, %v362
  %v364 = vpop.f32.mrb[0].mxu0
  %v365 = vpop.f32.mrb[0].mxu0
  %v366 = vpop.f32.mrb[0].mxu0
  %367 = vdwg.mxu0
  %vm368 = vcmp.gt.f32.partialorder %v348, 0.0
  %vm369 = vcmp.gt.f32.partialorder %v351, 0.0
  %vm370 = vcmp.gt.f32.partialorder %v358, 0.0
  %vm371 = vcmp.gt.f32.partialorder %v363, 0.0
  %v372 = vmin.f32 %v348, 0.0
  %v373 = vmin.f32 %v351, 0.0
  %v374 = vmin.f32 %v358, 0.0
  %v375 = vmin.f32 %v363, 0.0
  %v376 = vmul.f32 %v372, 1.442695
  %v377 = vpow.pop %v376
  %v378 = vmul.f32 %v373, 1.442695
  %v379 = vpow.pop %v378
  %v380 = vmul.f32 %v374, 1.442695
  %v381 = vpow.pop %v380
  %v382 = vmul.f32 %v375, 1.442695
  %v383 = vpow.pop %v382
  %v384 = vsub.f32 %v377, 1.0
  %v385 = vsub.f32 %v379, 1.0
  %v386 = vsub.f32 %v381, 1.0
  %v387 = vsub.f32 %v383, 1.0
  %v388 = vsel %vm368, %v348, %v384
  %v389 = vsel %vm369, %v351, %v385
  %v390 = vsel %vm370, %v358, %v386
  %v391 = vsel %vm371, %v363, %v387
  %392 = vst [vmem:[#allocation2 + $0x8] sm:$0xff] %v388
  %393 = vst [vmem:[#allocation2 + $0x10] sm:$0xff] %v389
  %394 = vst [vmem:[#allocation2 + $0x20] sm:$0xff] %v390
  %395 = vst [vmem:[#allocation2 + $0x28] sm:$0xff] %v391
  %v396 = vld [vmem:[%s4 + $0x1] sm:$0x1]
  %v397 = vld [vmem:[#allocation2 + $0x6] sm:$0xff]
  %v398 = vld [vmem:[#allocation2 + $0xe] sm:$0xff]
  %v399 = vld [vmem:[#allocation2 + $0x16] sm:$0xff]
  %v400 = vld [vmem:[#allocation2 + $0x1e] sm:$0xff]
  %v401 = vld [vmem:[#allocation2 + $0x26] sm:$0xff]
  %v402 = vld [vmem:[#allocation2 + $0x8] sm:$0xff]
  %v403 = vld [vmem:[#allocation2 + $0x10] sm:$0xff]
  %v404 = vld [vmem:[#allocation2 + $0x18] sm:$0xff]
  %v405 = vld [vmem:[#allocation2 + $0x20] sm:$0xff]
  %v406 = vld [vmem:[#allocation2 + $0x28] sm:$0xff]
  %v407 = vld [vmem:[#allocation2 + $0xa] sm:$0xff]
  %v408 = vld [vmem:[#allocation2 + $0x12] sm:$0xff]
  %v409 = vld [vmem:[#allocation2 + $0x1a] sm:$0xff]
  %v410 = vld [vmem:[#allocation2 + $0x22] sm:$0xff]
  %v411 = vld [vmem:[#allocation2 + $0x2a] sm:$0xff]
  %v412 = vpack.c.bf16 %v398, %v397
  %v413 = vpack.c.bf16 %v403, %v402
  %v414 = vpack.c.bf16 %v408, %v407
  %v415 = vpack.c.bf16 %v400, %v399
  %v416 = vpack.c.bf16 %v405, %v404
  %v417 = vpack.c.bf16 %v410, %v409
  %v418 = vpack.c.bf16 %v401, %v401
  %v419 = vpack.c.bf16 %v406, %v406
  %v420 = vpack.c.bf16 %v411, %v411
  %v421 = vld [vmem:[%s2] sm:$0xf]
  %v422 = vld [vmem:[%s2 + $0x4] sm:$0xf]
  %v423 = vld [vmem:[%s2 + $0x8] sm:$0xf]
  %v424 = vld [vmem:[%s2 + $0xc] sm:$0xf]
  %v425 = vld [vmem:[%s2 + $0x10] sm:$0xf]
  %v426 = vld [vmem:[%s2 + $0x14] sm:$0xf]
  %v427 = vld [vmem:[%s2 + $0x18] sm:$0xf]
  %v428 = vld [vmem:[%s2 + $0x1c] sm:$0xf]
  %v429 = vld [vmem:[%s2 + $0x20] sm:$0xf]
  %v430 = vld [vmem:[%s2 + $0x24] sm:$0xf]
  %v431 = vld [vmem:[%s2 + $0x28] sm:$0xf]
  %v432 = vld [vmem:[%s2 + $0x2c] sm:$0xf]
  %v433 = vld [vmem:[%s2 + $0x30] sm:$0xf]
  %v434 = vld [vmem:[%s2 + $0x34] sm:$0xf]
  %v435 = vld [vmem:[%s2 + $0x38] sm:$0xf]
  %v436 = vld [vmem:[%s2 + $0x3c] sm:$0xf]
  %v437 = vld [vmem:[%s2 + $0x40] sm:$0xf]
  %v438 = vld [vmem:[%s2 + $0x44] sm:$0xf]
  %v439 = vld [vmem:[%s2 + $0x48] sm:$0xf]
  %v440 = vld [vmem:[%s2 + $0x4c] sm:$0xf]
  %v441 = vld [vmem:[%s2 + $0x50] sm:$0xf]
  %v442 = vld [vmem:[%s2 + $0x54] sm:$0xf]
  %v443 = vld [vmem:[%s2 + $0x58] sm:$0xf]
  %v444 = vld [vmem:[%s2 + $0x5c] sm:$0xf]
  %v445 = vld [vmem:[%s2 + $0x60] sm:$0xf]
  %v446 = vld [vmem:[%s2 + $0x64] sm:$0xf]
  %v447 = vld [vmem:[%s2 + $0x68] sm:$0xf]
  %v448 = vld [vmem:[%s2 + $0x6c] sm:$0xf]
  %v449 = vld [vmem:[%s2 + $0x70] sm:$0xf]
  %v450 = vld [vmem:[%s2 + $0x74] sm:$0xf]
  %v451 = vld [vmem:[%s2 + $0x78] sm:$0xf]
  %v452 = vld [vmem:[%s2 + $0x7c] sm:$0xf]
  %v453 = vld [vmem:[%s2 + $0x80] sm:$0xf]
  %v454 = vld [vmem:[%s2 + $0x84] sm:$0xf]
  %v455 = vld [vmem:[%s2 + $0x88] sm:$0xf]
  %v456 = vld [vmem:[%s2 + $0x8c] sm:$0xf]
  %v457 = vld [vmem:[%s2 + $0x90] sm:$0xf]
  %v458 = vld [vmem:[%s2 + $0x94] sm:$0xf]
  %v459 = vld [vmem:[%s2 + $0x98] sm:$0xf]
  %v460 = vld [vmem:[%s2 + $0x9c] sm:$0xf]
  %v461 = vld [vmem:[%s2 + $0xa0] sm:$0xf]
  %v462 = vld [vmem:[%s2 + $0xa4] sm:$0xf]
  %v463 = vld [vmem:[%s2 + $0xa8] sm:$0xf]
  %v464 = vld [vmem:[%s2 + $0xac] sm:$0xf]
  %v465 = vld [vmem:[%s2 + $0xb0] sm:$0xf]
  %v466 = vld [vmem:[%s2 + $0xb4] sm:$0xf]
  %v467 = vld [vmem:[%s2 + $0xb8] sm:$0xf]
  %v468 = vld [vmem:[%s2 + $0xbc] sm:$0xf]
  %v469 = vlaneseq
  %v470 = vshrl.u32 %v469, 7
  %v471 = vsub.s32 0, %v470
  %v472 = vrot.slane %v396, %v471
  %v521 = vunpack.c.l.b16 %v421
  %v522 = vunpack.c.l.b16 %v422
  %v523 = vunpack.c.l.b16 %v423
  %v524 = vunpack.c.l.b16 %v424
  %v525 = vunpack.c.l.b16 %v425
  %v526 = vunpack.c.l.b16 %v426
  %v527 = vunpack.c.l.b16 %v427
  %v528 = vunpack.c.l.b16 %v428
  %v529 = vunpack.c.l.b16 %v429
  %v530 = vunpack.c.l.b16 %v430
  %v531 = vunpack.c.l.b16 %v431
  %v532 = vunpack.c.l.b16 %v432
  %v533 = vunpack.c.l.b16 %v433
  %v534 = vunpack.c.l.b16 %v434
  %v535 = vunpack.c.l.b16 %v435
  %v536 = vunpack.c.l.b16 %v436
  %v537 = vunpack.c.l.b16 %v437
  %v538 = vunpack.c.l.b16 %v438
  %v539 = vunpack.c.l.b16 %v439
  %v540 = vunpack.c.l.b16 %v440
  %v541 = vunpack.c.l.b16 %v441
  %v542 = vunpack.c.l.b16 %v442
  %v543 = vunpack.c.l.b16 %v443
  %v544 = vunpack.c.l.b16 %v444
  %v545 = vunpack.c.l.b16 %v445
  %v546 = vunpack.c.l.b16 %v446
  %v547 = vunpack.c.l.b16 %v447
  %v548 = vunpack.c.l.b16 %v448
  %v549 = vunpack.c.l.b16 %v449
  %v550 = vunpack.c.l.b16 %v450
  %v551 = vunpack.c.l.b16 %v451
  %v552 = vunpack.c.l.b16 %v452
  %v553 = vunpack.c.l.b16 %v453
  %v554 = vunpack.c.l.b16 %v454
  %v555 = vunpack.c.l.b16 %v455
  %v556 = vunpack.c.l.b16 %v456
  %v557 = vunpack.c.l.b16 %v457
  %v558 = vunpack.c.l.b16 %v458
  %v559 = vunpack.c.l.b16 %v459
  %v560 = vunpack.c.l.b16 %v460
  %v561 = vunpack.c.l.b16 %v461
  %v562 = vunpack.c.l.b16 %v462
  %v563 = vunpack.c.l.b16 %v463
  %v564 = vunpack.c.l.b16 %v464
  %v565 = vunpack.c.l.b16 %v465
  %v566 = vunpack.c.l.b16 %v466
  %v567 = vunpack.c.l.b16 %v467
  %v568 = vunpack.c.l.b16 %v468
  %v569 = vpack.c.b16 %v522, %v521
  %v570 = vpack.c.b16 %v524, %v523
  %v571 = vpack.c.b16 %v526, %v525
  %v572 = vpack.c.b16 %v528, %v527
  %v573 = vpack.c.b16 %v530, %v529
  %v574 = vpack.c.b16 %v532, %v531
  %v575 = vpack.c.b16 %v534, %v533
  %v576 = vpack.c.b16 %v536, %v535
  %v577 = vpack.c.b16 %v538, %v537
  %v578 = vpack.c.b16 %v540, %v539
  %v579 = vpack.c.b16 %v542, %v541
  %v580 = vpack.c.b16 %v544, %v543
  %v581 = vpack.c.b16 %v546, %v545
  %v582 = vpack.c.b16 %v548, %v547
  %v583 = vpack.c.b16 %v550, %v549
  %v584 = vpack.c.b16 %v552, %v551
  %v585 = vpack.c.b16 %v554, %v553
  %v586 = vpack.c.b16 %v556, %v555
  %v587 = vpack.c.b16 %v558, %v557
  %v588 = vpack.c.b16 %v560, %v559
  %v589 = vpack.c.b16 %v562, %v561
  %v590 = vpack.c.b16 %v564, %v563
  %v591 = vpack.c.b16 %v566, %v565
  %v592 = vpack.c.b16 %v568, %v567
  %617 = vmatprep.subr.bf16.mxu0 0
  %618 = vmatpush1.bf16.msra.mxu0 %v569
  %619 = vmatprep.subr.bf16.mxu0 0
  %620 = vmatpush1.bf16.msra.mxu0 %v570
  %621 = vmatprep.subr.bf16.mxu0 0
  %622 = vmatpush1.bf16.msra.mxu0 %v571
  %623 = vmatprep.subr.bf16.mxu0 0
  %624 = vmatpush1.bf16.msra.mxu0 %v572
  %625 = vmatprep.subr.bf16.mxu0 0
  %626 = vmatpush1.bf16.msra.mxu0 %v573
  %627 = vmatprep.subr.bf16.mxu0 0
  %628 = vmatpush1.bf16.msra.mxu0 %v574
  %629 = vmatprep.subr.bf16.mxu0 0
  %630 = vmatpush1.bf16.msra.mxu0 %v575
  %631 = vmatprep.subr.bf16.mxu0 0
  %632 = vmatpush1.bf16.msra.mxu0 %v576
  %633 = vmatprep.subr.bf16.mxu0 0
  %634 = vmatpush1.bf16.msra.mxu0 %v577
  %635 = vmatprep.subr.bf16.mxu0 0
  %636 = vmatpush1.bf16.msra.mxu0 %v578
  %637 = vmatprep.subr.bf16.mxu0 0
  %638 = vmatpush1.bf16.msra.mxu0 %v579
  %639 = vmatprep.subr.bf16.mxu0 0
  %640 = vmatpush1.bf16.msra.mxu0 %v580
  %641 = vmatprep.subr.bf16.mxu0 0
  %642 = vmatpush1.bf16.msra.mxu0 %v581
  %643 = vmatprep.subr.bf16.mxu0 0
  %644 = vmatpush1.bf16.msra.mxu0 %v582
  %645 = vmatprep.subr.bf16.mxu0 0
  %646 = vmatpush1.bf16.msra.mxu0 %v583
  %647 = vmatprep.subr.bf16.mxu0 0
  %648 = vmatpush1.bf16.msra.mxu0 %v584
  %649 = vmatprep.mubr.bf16.mxu0 %v413
  %650 = vmatmul.mubr.bf16.gmra.mrb[0].mxu0 %v412
  %v651 = vpop.f32.mrb[0].mxu0
  %v652 = vadd.f32 %v472, %v651
  %v653 = vpop.f32.mrb[0].mxu0
  %v654 = vpop.f32.mrb[0].mxu0
  %v655 = vadd.f32 %v472, %v654
  %v656 = vpop.f32.mrb[0].mxu0
  %657 = vmatprep.mubr.bf16.mxu0 %v416
  %658 = vmatmul.mubr.bf16.gmra.mrb[0].mxu0 %v415
  %v659 = vpop.f32.mrb[0].mxu0
  %v660 = vpop.f32.mrb[0].mxu0
  %v661 = vpop.f32.mrb[0].mxu0
  %v662 = vadd.f32 %v472, %v661
  %v663 = vpop.f32.mrb[0].mxu0
  %664 = vmatprep.mubr.bf16.mxu0 %v419
  %665 = vmatmul.mubr.bf16.gmra.mrb[0].mxu0 %v418
  %v666 = vpop.f32.mrb[0].mxu0
  %v667 = vadd.f32 %v472, %v666
  %v668 = vpop.f32.mrb[0].mxu0
  %v669 = vpop.f32.mrb[0].mxu0
  %v670 = vpop.f32.mrb[0].mxu0
  %671 = vdwg.mxu0
  %672 = vmatprep.subr.bf16.mxu0 0
  %673 = vmatpush1.bf16.msra.mxu0 %v585
  %674 = vmatprep.subr.bf16.mxu0 0
  %675 = vmatpush1.bf16.msra.mxu0 %v586
  %676 = vmatprep.subr.bf16.mxu0 0
  %677 = vmatpush1.bf16.msra.mxu0 %v587
  %678 = vmatprep.subr.bf16.mxu0 0
  %679 = vmatpush1.bf16.msra.mxu0 %v588
  %680 = vmatprep.subr.bf16.mxu0 0
  %681 = vmatpush1.bf16.msra.mxu0 %v589
  %682 = vmatprep.subr.bf16.mxu0 0
  %683 = vmatpush1.bf16.msra.mxu0 %v590
  %684 = vmatprep.subr.bf16.mxu0 0
  %685 = vmatpush1.bf16.msra.mxu0 %v591
  %686 = vmatprep.subr.bf16.mxu0 0
  %687 = vmatpush1.bf16.msra.mxu0 %v592
  %688 = vmatprep.subr.bf16.mxu0 0
  %689 = vmatpush1.bf16.msra.mxu0 0
  %690 = vmatprep.subr.bf16.mxu0 0
  %691 = vmatpush1.bf16.msra.mxu0 0
  %692 = vmatprep.subr.bf16.mxu0 0
  %693 = vmatpush1.bf16.msra.mxu0 0
  %694 = vmatprep.subr.bf16.mxu0 0
  %695 = vmatpush1.bf16.msra.mxu0 0
  %696 = vmatprep.subr.bf16.mxu0 0
  %697 = vmatpush1.bf16.msra.mxu0 0
  %698 = vmatprep.subr.bf16.mxu0 0
  %699 = vmatpush1.bf16.msra.mxu0 0
  %700 = vmatprep.subr.bf16.mxu0 0
  %701 = vmatpush1.bf16.msra.mxu0 0
  %702 = vmatprep.subr.bf16.mxu0 0
  %703 = vmatpush1.bf16.msra.mxu0 0
  %704 = vmatprep.mubr.bf16.mxu0 0
  %705 = vmatmul.mubr.bf16.gmra.mrb[0].mxu0 %v414
  %v706 = vpop.f32.mrb[0].mxu0
  %v707 = vadd.f32 %v652, %v706
  %v708 = vpop.f32.mrb[0].mxu0
  %v709 = vpop.f32.mrb[0].mxu0
  %v710 = vadd.f32 %v655, %v709
  %v711 = vpop.f32.mrb[0].mxu0
  %712 = vmatprep.mubr.bf16.mxu0 0
  %713 = vmatmul.mubr.bf16.gmra.mrb[0].mxu0 %v417
  %v714 = vpop.f32.mrb[0].mxu0
  %v715 = vpop.f32.mrb[0].mxu0
  %v716 = vpop.f32.mrb[0].mxu0
  %v717 = vadd.f32 %v662, %v716
  %v718 = vpop.f32.mrb[0].mxu0
  %719 = vmatprep.mubr.bf16.mxu0 0
  %720 = vmatmul.mubr.bf16.gmra.mrb[0].mxu0 %v420
  %v721 = vpop.f32.mrb[0].mxu0
  %v722 = vadd.f32 %v667, %v721
  %v723 = vpop.f32.mrb[0].mxu0
  %v724 = vpop.f32.mrb[0].mxu0
  %v725 = vpop.f32.mrb[0].mxu0
  %726 = vdwg.mxu0
  %vm727 = vcmp.gt.f32.partialorder %v707, 0.0
  %vm728 = vcmp.gt.f32.partialorder %v710, 0.0
  %vm729 = vcmp.gt.f32.partialorder %v717, 0.0
  %vm730 = vcmp.gt.f32.partialorder %v722, 0.0
  %v731 = vmin.f32 %v707, 0.0
  %v732 = vmin.f32 %v710, 0.0
  %v733 = vmin.f32 %v717, 0.0
  %v734 = vmin.f32 %v722, 0.0
  %v735 = vmul.f32 %v731, 1.442695
  %v736 = vpow.pop %v735
  %v737 = vmul.f32 %v732, 1.442695
  %v738 = vpow.pop %v737
  %v739 = vmul.f32 %v733, 1.442695
  %v740 = vpow.pop %v739
  %v741 = vmul.f32 %v734, 1.442695
  %v742 = vpow.pop %v741
  %v743 = vsub.f32 %v736, 1.0
  %v744 = vsub.f32 %v738, 1.0
  %v745 = vsub.f32 %v740, 1.0
  %v746 = vsub.f32 %v742, 1.0
  %v747 = vsel %vm727, %v707, %v743
  %v748 = vsel %vm728, %v710, %v744
  %v749 = vsel %vm729, %v717, %v745
  %v750 = vsel %vm730, %v722, %v746
  %751 = vst [vmem:[#allocation2 + $0x8] sm:$0xff] %v747
  %752 = vst [vmem:[#allocation2 + $0x10] sm:$0xff] %v748
  %753 = vst [vmem:[#allocation2 + $0x20] sm:$0xff] %v749
  %754 = vst [vmem:[#allocation2 + $0x28] sm:$0xff] %v750
  %v755 = vld [vmem:[%s4 + $0x2] sm:$0x1]
  %v756 = vld [vmem:[#allocation2 + $0x5] sm:$0xff]
  %v757 = vld [vmem:[#allocation2 + $0xd] sm:$0xff]
  %v758 = vld [vmem:[#allocation2 + $0x15] sm:$0xff]
  %v759 = vld [vmem:[#allocation2 + $0x1d] sm:$0xff]
  %v760 = vld [vmem:[#allocation2 + $0x25] sm:$0xff]
  %v761 = vld [vmem:[#allocation2 + $0x8] sm:$0xff]
  %v762 = vld [vmem:[#allocation2 + $0x10] sm:$0xff]
  %v763 = vld [vmem:[#allocation2 + $0x18] sm:$0xff]
  %v764 = vld [vmem:[#allocation2 + $0x20] sm:$0xff]
  %v765 = vld [vmem:[#allocation2 + $0x28] sm:$0xff]
  %v766 = vld [vmem:[#allocation2 + $0xb] sm:$0xff]
  %v767 = vld [vmem:[#allocation2 + $0x13] sm:$0xff]
  %v768 = vld [vmem:[#allocation2 + $0x1b] sm:$0xff]
  %v769 = vld [vmem:[#allocation2 + $0x23] sm:$0xff]
  %v770 = vld [vmem:[#allocation2 + $0x2b] sm:$0xff]
  %v771 = vpack.c.bf16 %v757, %v756
  %v772 = vpack.c.bf16 %v762, %v761
  %v773 = vpack.c.bf16 %v767, %v766
  %v774 = vpack.c.bf16 %v759, %v758
  %v775 = vpack.c.bf16 %v764, %v763
  %v776 = vpack.c.bf16 %v769, %v768
  %v777 = vpack.c.bf16 %v760, %v760
  %v778 = vpack.c.bf16 %v765, %v765
  %v779 = vpack.c.bf16 %v770, %v770
  %v780 = vld [vmem:[%s3] sm:$0xf]
  %v781 = vld [vmem:[%s3 + $0x4] sm:$0xf]
  %v782 = vld [vmem:[%s3 + $0x8] sm:$0xf]
  %v783 = vld [vmem:[%s3 + $0xc] sm:$0xf]
  %v784 = vld [vmem:[%s3 + $0x10] sm:$0xf]
  %v785 = vld [vmem:[%s3 + $0x14] sm:$0xf]
  %v786 = vld [vmem:[%s3 + $0x18] sm:$0xf]
  %v787 = vld [vmem:[%s3 + $0x1c] sm:$0xf]
  %v788 = vld [vmem:[%s3 + $0x20] sm:$0xf]
  %v789 = vld [vmem:[%s3 + $0x24] sm:$0xf]
  %v790 = vld [vmem:[%s3 + $0x28] sm:$0xf]
  %v791 = vld [vmem:[%s3 + $0x2c] sm:$0xf]
  %v792 = vld [vmem:[%s3 + $0x30] sm:$0xf]
  %v793 = vld [vmem:[%s3 + $0x34] sm:$0xf]
  %v794 = vld [vmem:[%s3 + $0x38] sm:$0xf]
  %v795 = vld [vmem:[%s3 + $0x3c] sm:$0xf]
  %v796 = vld [vmem:[%s3 + $0x40] sm:$0xf]
  %v797 = vld [vmem:[%s3 + $0x44] sm:$0xf]
  %v798 = vld [vmem:[%s3 + $0x48] sm:$0xf]
  %v799 = vld [vmem:[%s3 + $0x4c] sm:$0xf]
  %v800 = vld [vmem:[%s3 + $0x50] sm:$0xf]
  %v801 = vld [vmem:[%s3 + $0x54] sm:$0xf]
  %v802 = vld [vmem:[%s3 + $0x58] sm:$0xf]
  %v803 = vld [vmem:[%s3 + $0x5c] sm:$0xf]
  %v804 = vld [vmem:[%s3 + $0x60] sm:$0xf]
  %v805 = vld [vmem:[%s3 + $0x64] sm:$0xf]
  %v806 = vld [vmem:[%s3 + $0x68] sm:$0xf]
  %v807 = vld [vmem:[%s3 + $0x6c] sm:$0xf]
  %v808 = vld [vmem:[%s3 + $0x70] sm:$0xf]
  %v809 = vld [vmem:[%s3 + $0x74] sm:$0xf]
  %v810 = vld [vmem:[%s3 + $0x78] sm:$0xf]
  %v811 = vld [vmem:[%s3 + $0x7c] sm:$0xf]
  %v812 = vld [vmem:[%s3 + $0x80] sm:$0xf]
  %v813 = vld [vmem:[%s3 + $0x84] sm:$0xf]
  %v814 = vld [vmem:[%s3 + $0x88] sm:$0xf]
  %v815 = vld [vmem:[%s3 + $0x8c] sm:$0xf]
  %v816 = vld [vmem:[%s3 + $0x90] sm:$0xf]
  %v817 = vld [vmem:[%s3 + $0x94] sm:$0xf]
  %v818 = vld [vmem:[%s3 + $0x98] sm:$0xf]
  %v819 = vld [vmem:[%s3 + $0x9c] sm:$0xf]
  %v820 = vld [vmem:[%s3 + $0xa0] sm:$0xf]
  %v821 = vld [vmem:[%s3 + $0xa4] sm:$0xf]
  %v822 = vld [vmem:[%s3 + $0xa8] sm:$0xf]
  %v823 = vld [vmem:[%s3 + $0xac] sm:$0xf]
  %v824 = vld [vmem:[%s3 + $0xb0] sm:$0xf]
  %v825 = vld [vmem:[%s3 + $0xb4] sm:$0xf]
  %v826 = vld [vmem:[%s3 + $0xb8] sm:$0xf]
  %v827 = vld [vmem:[%s3 + $0xbc] sm:$0xf]
  %v828 = vlaneseq
  %v829 = vshrl.u32 %v828, 7
  %v830 = vsub.s32 0, %v829
  %v831 = vrot.slane %v755, %v830
  %v880 = vunpack.c.l.b16 %v780
  %v881 = vunpack.c.l.b16 %v781
  %v882 = vunpack.c.l.b16 %v782
  %v883 = vunpack.c.l.b16 %v783
  %v884 = vunpack.c.l.b16 %v784
  %v885 = vunpack.c.l.b16 %v785
  %v886 = vunpack.c.l.b16 %v786
  %v887 = vunpack.c.l.b16 %v787
  %v888 = vunpack.c.l.b16 %v788
  %v889 = vunpack.c.l.b16 %v789
  %v890 = vunpack.c.l.b16 %v790
  %v891 = vunpack.c.l.b16 %v791
  %v892 = vunpack.c.l.b16 %v792
  %v893 = vunpack.c.l.b16 %v793
  %v894 = vunpack.c.l.b16 %v794
  %v895 = vunpack.c.l.b16 %v795
  %v896 = vunpack.c.l.b16 %v796
  %v897 = vunpack.c.l.b16 %v797
  %v898 = vunpack.c.l.b16 %v798
  %v899 = vunpack.c.l.b16 %v799
  %v900 = vunpack.c.l.b16 %v800
  %v901 = vunpack.c.l.b16 %v801
  %v902 = vunpack.c.l.b16 %v802
  %v903 = vunpack.c.l.b16 %v803
  %v904 = vunpack.c.l.b16 %v804
  %v905 = vunpack.c.l.b16 %v805
  %v906 = vunpack.c.l.b16 %v806
  %v907 = vunpack.c.l.b16 %v807
  %v908 = vunpack.c.l.b16 %v808
  %v909 = vunpack.c.l.b16 %v809
  %v910 = vunpack.c.l.b16 %v810
  %v911 = vunpack.c.l.b16 %v811
  %v912 = vunpack.c.l.b16 %v812
  %v913 = vunpack.c.l.b16 %v813
  %v914 = vunpack.c.l.b16 %v814
  %v915 = vunpack.c.l.b16 %v815
  %v916 = vunpack.c.l.b16 %v816
  %v917 = vunpack.c.l.b16 %v817
  %v918 = vunpack.c.l.b16 %v818
  %v919 = vunpack.c.l.b16 %v819
  %v920 = vunpack.c.l.b16 %v820
  %v921 = vunpack.c.l.b16 %v821
  %v922 = vunpack.c.l.b16 %v822
  %v923 = vunpack.c.l.b16 %v823
  %v924 = vunpack.c.l.b16 %v824
  %v925 = vunpack.c.l.b16 %v825
  %v926 = vunpack.c.l.b16 %v826
  %v927 = vunpack.c.l.b16 %v827
  %v928 = vpack.c.b16 %v881, %v880
  %v929 = vpack.c.b16 %v883, %v882
  %v930 = vpack.c.b16 %v885, %v884
  %v931 = vpack.c.b16 %v887, %v886
  %v932 = vpack.c.b16 %v889, %v888
  %v933 = vpack.c.b16 %v891, %v890
  %v934 = vpack.c.b16 %v893, %v892
  %v935 = vpack.c.b16 %v895, %v894
  %v936 = vpack.c.b16 %v897, %v896
  %v937 = vpack.c.b16 %v899, %v898
  %v938 = vpack.c.b16 %v901, %v900
  %v939 = vpack.c.b16 %v903, %v902
  %v940 = vpack.c.b16 %v905, %v904
  %v941 = vpack.c.b16 %v907, %v906
  %v942 = vpack.c.b16 %v909, %v908
  %v943 = vpack.c.b16 %v911, %v910
  %v944 = vpack.c.b16 %v913, %v912
  %v945 = vpack.c.b16 %v915, %v914
  %v946 = vpack.c.b16 %v917, %v916
  %v947 = vpack.c.b16 %v919, %v918
  %v948 = vpack.c.b16 %v921, %v920
  %v949 = vpack.c.b16 %v923, %v922
  %v950 = vpack.c.b16 %v925, %v924
  %v951 = vpack.c.b16 %v927, %v926
  %976 = vmatprep.subr.bf16.mxu0 0
  %977 = vmatpush1.bf16.msra.mxu0 %v928
  %978 = vmatprep.subr.bf16.mxu0 0
  %979 = vmatpush1.bf16.msra.mxu0 %v929
  %980 = vmatprep.subr.bf16.mxu0 0
  %981 = vmatpush1.bf16.msra.mxu0 %v930
  %982 = vmatprep.subr.bf16.mxu0 0
  %983 = vmatpush1.bf16.msra.mxu0 %v931
  %984 = vmatprep.subr.bf16.mxu0 0
  %985 = vmatpush1.bf16.msra.mxu0 %v932
  %986 = vmatprep.subr.bf16.mxu0 0
  %987 = vmatpush1.bf16.msra.mxu0 %v933
  %988 = vmatprep.subr.bf16.mxu0 0
  %989 = vmatpush1.bf16.msra.mxu0 %v934
  %990 = vmatprep.subr.bf16.mxu0 0
  %991 = vmatpush1.bf16.msra.mxu0 %v935
  %992 = vmatprep.subr.bf16.mxu0 0
  %993 = vmatpush1.bf16.msra.mxu0 %v936
  %994 = vmatprep.subr.bf16.mxu0 0
  %995 = vmatpush1.bf16.msra.mxu0 %v937
  %996 = vmatprep.subr.bf16.mxu0 0
  %997 = vmatpush1.bf16.msra.mxu0 %v938
  %998 = vmatprep.subr.bf16.mxu0 0
  %999 = vmatpush1.bf16.msra.mxu0 %v939
  %1000 = vmatprep.subr.bf16.mxu0 0
  %1001 = vmatpush1.bf16.msra.mxu0 %v940
  %1002 = vmatprep.subr.bf16.mxu0 0
  %1003 = vmatpush1.bf16.msra.mxu0 %v941
  %1004 = vmatprep.subr.bf16.mxu0 0
  %1005 = vmatpush1.bf16.msra.mxu0 %v942
  %1006 = vmatprep.subr.bf16.mxu0 0
  %1007 = vmatpush1.bf16.msra.mxu0 %v943
  %1008 = vmatprep.mubr.bf16.mxu0 %v772
  %1009 = vmatmul.mubr.bf16.gmra.mrb[0].mxu0 %v771
  %v1010 = vpop.f32.mrb[0].mxu0
  %v1011 = vadd.f32 %v831, %v1010
  %v1012 = vpop.f32.mrb[0].mxu0
  %v1013 = vpop.f32.mrb[0].mxu0
  %v1014 = vadd.f32 %v831, %v1013
  %v1015 = vpop.f32.mrb[0].mxu0
  %1016 = vmatprep.mubr.bf16.mxu0 %v775
  %1017 = vmatmul.mubr.bf16.gmra.mrb[0].mxu0 %v774
  %v1018 = vpop.f32.mrb[0].mxu0
  %v1019 = vpop.f32.mrb[0].mxu0
  %v1020 = vpop.f32.mrb[0].mxu0
  %v1021 = vadd.f32 %v831, %v1020
  %v1022 = vpop.f32.mrb[0].mxu0
  %1023 = vmatprep.mubr.bf16.mxu0 %v778
  %1024 = vmatmul.mubr.bf16.gmra.mrb[0].mxu0 %v777
  %v1025 = vpop.f32.mrb[0].mxu0
  %v1026 = vadd.f32 %v831, %v1025
  %v1027 = vpop.f32.mrb[0].mxu0
  %v1028 = vpop.f32.mrb[0].mxu0
  %v1029 = vpop.f32.mrb[0].mxu0
  %1030 = vdwg.mxu0
  %1031 = vmatprep.subr.bf16.mxu0 0
  %1032 = vmatpush1.bf16.msra.mxu0 %v944
  %1033 = vmatprep.subr.bf16.mxu0 0
  %1034 = vmatpush1.bf16.msra.mxu0 %v945
  %1035 = vmatprep.subr.bf16.mxu0 0
  %1036 = vmatpush1.bf16.msra.mxu0 %v946
  %1037 = vmatprep.subr.bf16.mxu0 0
  %1038 = vmatpush1.bf16.msra.mxu0 %v947
  %1039 = vmatprep.subr.bf16.mxu0 0
  %1040 = vmatpush1.bf16.msra.mxu0 %v948
  %1041 = vmatprep.subr.bf16.mxu0 0
  %1042 = vmatpush1.bf16.msra.mxu0 %v949
  %1043 = vmatprep.subr.bf16.mxu0 0
  %1044 = vmatpush1.bf16.msra.mxu0 %v950
  %1045 = vmatprep.subr.bf16.mxu0 0
  %1046 = vmatpush1.bf16.msra.mxu0 %v951
  %1047 = vmatprep.subr.bf16.mxu0 0
  %1048 = vmatpush1.bf16.msra.mxu0 0
  %1049 = vmatprep.subr.bf16.mxu0 0
  %1050 = vmatpush1.bf16.msra.mxu0 0
  %1051 = vmatprep.subr.bf16.mxu0 0
  %1052 = vmatpush1.bf16.msra.mxu0 0
  %1053 = vmatprep.subr.bf16.mxu0 0
  %1054 = vmatpush1.bf16.msra.mxu0 0
  %1055 = vmatprep.subr.bf16.mxu0 0
  %1056 = vmatpush1.bf16.msra.mxu0 0
  %1057 = vmatprep.subr.bf16.mxu0 0
  %1058 = vmatpush1.bf16.msra.mxu0 0
  %1059 = vmatprep.subr.bf16.mxu0 0
  %1060 = vmatpush1.bf16.msra.mxu0 0
  %1061 = vmatprep.subr.bf16.mxu0 0
  %1062 = vmatpush1.bf16.msra.mxu0 0
  %1063 = vmatprep.mubr.bf16.mxu0 0
  %1064 = vmatmul.mubr.bf16.gmra.mrb[0].mxu0 %v773
  %v1065 = vpop.f32.mrb[0].mxu0
  %v1066 = vadd.f32 %v1011, %v1065
  %v1067 = vpop.f32.mrb[0].mxu0
  %v1068 = vpop.f32.mrb[0].mxu0
  %v1069 = vadd.f32 %v1014, %v1068
  %v1070 = vpop.f32.mrb[0].mxu0
  %1071 = vmatprep.mubr.bf16.mxu0 0
  %1072 = vmatmul.mubr.bf16.gmra.mrb[0].mxu0 %v776
  %v1073 = vpop.f32.mrb[0].mxu0
  %v1074 = vpop.f32.mrb[0].mxu0
  %v1075 = vpop.f32.mrb[0].mxu0
  %v1076 = vadd.f32 %v1021, %v1075
  %v1077 = vpop.f32.mrb[0].mxu0
  %1078 = vmatprep.mubr.bf16.mxu0 0
  %1079 = vmatmul.mubr.bf16.gmra.mrb[0].mxu0 %v779
  %v1080 = vpop.f32.mrb[0].mxu0
  %v1081 = vadd.f32 %v1026, %v1080
  %v1082 = vpop.f32.mrb[0].mxu0
  %v1083 = vpop.f32.mrb[0].mxu0
  %v1084 = vpop.f32.mrb[0].mxu0
  %1085 = vdwg.mxu0
  %vm1086 = vcmp.gt.f32.partialorder %v1066, 0.0
  %vm1087 = vcmp.gt.f32.partialorder %v1069, 0.0
  %vm1088 = vcmp.gt.f32.partialorder %v1076, 0.0
  %vm1089 = vcmp.gt.f32.partialorder %v1081, 0.0
  %v1090 = vmin.f32 %v1066, 0.0
  %v1091 = vmin.f32 %v1069, 0.0
  %v1092 = vmin.f32 %v1076, 0.0
  %v1093 = vmin.f32 %v1081, 0.0
  %v1094 = vmul.f32 %v1090, 1.442695
  %v1095 = vpow.pop %v1094
  %v1096 = vmul.f32 %v1091, 1.442695
  %v1097 = vpow.pop %v1096
  %v1098 = vmul.f32 %v1092, 1.442695
  %v1099 = vpow.pop %v1098
  %v1100 = vmul.f32 %v1093, 1.442695
  %v1101 = vpow.pop %v1100
  %v1102 = vsub.f32 %v1095, 1.0
  %v1103 = vsub.f32 %v1097, 1.0
  %v1104 = vsub.f32 %v1099, 1.0
  %v1105 = vsub.f32 %v1101, 1.0
  %v1106 = vsel %vm1086, %v1066, %v1102
  %v1107 = vsel %vm1087, %v1069, %v1103
  %v1108 = vsel %vm1088, %v1076, %v1104
  %v1109 = vsel %vm1089, %v1081, %v1105
  %v1110 = vadd.f32 %v388, %v747
  %v1111 = vadd.f32 %v389, %v748
  %v1112 = vadd.f32 %v390, %v749
  %v1113 = vadd.f32 %v391, %v750
  %v1114 = vadd.f32 %v1110, %v1106
  %v1115 = vadd.f32 %v1111, %v1107
  %v1116 = vadd.f32 %v1112, %v1108
  %v1117 = vadd.f32 %v1113, %v1109
  %1118 = vst [vmem:[%s5] sm:$0xff] %v1114
  %1119 = vst [vmem:[%s5 + $0x8] sm:$0xff] %v1115
  %s1120 = scalar_lea.vmem %s5, 16
  %1121 = vst [vmem:[%s1120] sm:$0xff] %v1116
  %1122 = vst [vmem:[%s1120 + $0x8] sm:$0xff] %v1117
  // Predicated region
  $region22: #{dblock_forward.1} parent=0 // pred_check
    _
  $region23: #{dblock_forward.1} parent=0 // pred_check_branch
    %1124 = sbr.rel (0) target = $region25
  $region24: #{dblock_forward.1} parent=0 // pred_region
    _
  $region25: #{dblock_forward.1} parent=0 // pred_fallthru
    _
  // Predicated region
  $region26: #{dblock_forward.1} parent=0 // pred_check
    _
  $region27: #{dblock_forward.1} parent=0 // pred_check_branch
    %1126 = sbr.rel (0) target = $region29
  $region28: #{dblock_forward.1} parent=0 // pred_region
    _
  $region29: #{dblock_forward.1} parent=0 // pred_fallthru
    _

</llo_original>
